<compile_context>
chip_gen: v6e
topology: v6e:2x2x1
jax: 0.10.0
libtpu: 0.0.40
codegen_flags: <defaults>
</compile_context>

<pallas_src>
import functools

import jax
import jax.numpy as jnp
from jax.experimental import pallas as pl
from jax.experimental.pallas import tpu as pltpu


def _round_up(n, m):
    return ((n + m - 1) // m) * m


def _param_layout(H, L):
    """Row/width layout of the packed static-parameter operand (B-independent)."""
    width = max(2 * H, L)
    bias_row = _round_up(H, 8)       # fused bias row (8-aligned)
    attn_row = bias_row + 8          # attention-logits row (8-aligned)
    n_rows = attn_row + 8
    return width, bias_row, attn_row, n_rows


def pack_params(w_mu, b_mu, w_lv, b_lv, attn_param):
    """One-time packing of all static parameters into a single tiny f32 operand.

    rows [0, H)    cols [0, 2H) : W = [W_mu.T | W_lv.T]          (H, 2H)
    row  bias_row  cols [0, 2H) : b = [b_mu | b_lv]              (1, 2H)
    row  attn_row  cols [0, L)  : attention logits               (1, L)

    so that  last(B, H) @ W + b == [mu | logvar]  of shape (B, 2H).
    Batch-size independent; call once at setup.
    """
    H = w_mu.shape[0]
    L = attn_param.shape[0]
    width, bias_row, attn_row, n_rows = _param_layout(H, L)

    params = jnp.zeros((n_rows, width), jnp.float32)
    params = params.at[0:H, 0:H].set(w_mu.T.astype(jnp.float32))
    params = params.at[0:H, H:2 * H].set(w_lv.T.astype(jnp.float32))
    params = params.at[bias_row, 0:H].set(b_mu.astype(jnp.float32))
    params = params.at[bias_row, H:2 * H].set(b_lv.astype(jnp.float32))
    params = params.at[attn_row, 0:L].set(attn_param.astype(jnp.float32))
    return params


def _mlp_vae_kernel(data_ref, params_ref, out_ref, *,
                    B, H, L, rB, bias_row, attn_row, out_w):
    BH = B * H

    # data rows: [0, L) = x layers flattened to (L, B*H)
    #            [L, L+B)        = last_hidden as (B, H)   (cols 0..H-1)
    #            [L+rB, L+rB+B)  = eps         as (B, H)   (cols 0..H-1)
    data = data_ref[...]                                         # (L + 2*rB, B*H)
    x = data[0:L, :]                                             # (L, B*H)
    last = data[L:L + B, 0:H]                                    # (B, H)
    eps = data[L + rB:L + rB + B, 0:H]                           # (B, H)

    w = params_ref[0:H, :][:, 0:2 * H]                           # (H, 2H)
    b = params_ref[bias_row:bias_row + 1, :][:, 0:2 * H]         # (1, 2H)
    logits = params_ref[attn_row:attn_row + 1, :][:, 0:L]        # (1, L)

    # estimate(): mu and logvar for all batch rows in ONE M=B MXU matmul.
    mulv = jnp.dot(last, w, preferred_element_type=jnp.float32) + b   # (B, 2H)
    mu = mulv[:, 0:H]                                            # (B, H)
    lv = mulv[:, H:2 * H]                                        # (B, H)

    # reparameterize() + kl_div(): std computed once, exp(lv) reused as std^2.
    std = jnp.exp(0.5 * lv)
    z = mu + std * eps                                           # (B, H)
    kl = 0.5 * jnp.sum(std * std + mu * mu - lv - 1.0) / jnp.float32(B)

    # softmax over the L attention logits (lane-axis reduce, EXACT reciprocal
    # to preserve the 1e-6 attn tolerance).
    m = jnp.max(logits, axis=-1, keepdims=True)
    e = jnp.exp(logits - m)
    a = e * pl.reciprocal(jnp.sum(e, axis=-1, keepdims=True))    # (1, L)

    # tgt = mean_l attn[l] * x[l] -> single (1,L)@(L,B*H) matmul, 1/L folded in.
    tgt = jnp.dot(a * jnp.float32(1.0 / L), x,
                  preferred_element_type=jnp.float32)            # (1, B*H)

    # rec = mean((z - tgt)^2): per-batch static lane slices of tgt against the
    # (B, H) z (avoids any in-kernel lane<->sublane reshape); accumulate the
    # squared diffs as a (1, H) vector and reduce once.
    sq = jnp.zeros((1, H), jnp.float32)
    for bi in range(B):
        d = z[bi:bi + 1, :] - tgt[:, bi * H:(bi + 1) * H]
        sq = sq + d * d
    rec = jnp.sum(sq) / jnp.float32(BH)

    # Single lane-dense output row: loss in lane 0, attn in lanes [32, 32+L).
    out_ref[...] = jnp.zeros((1, out_w), jnp.float32)
    out_ref[0:1, 0:1] = jnp.broadcast_to(rec + kl, (1, 1))
    out_ref[0:1, 32:32 + L] = a


@jax.jit
def mlp_forward(x_stack, params, eps):
    """x_stack: (L, B, H) f32; params: pack_params(...); eps: (B, H) f32.

    Returns (scalar loss, attn of shape (L, 1, 1)), matching MLP.forward().
    """
    L, B, H = x_stack.shape
    BH = B * H
    rB = _round_up(B, 8)
    width, bias_row, attn_row, n_rows = _param_layout(H, L)
    out_w = max(128, _round_up(32 + L, 128))
    assert params.shape == (n_rows, width), (params.shape, (n_rows, width))

    # Two DMA'd inputs total: (x | last | eps) packed into one operand, plus
    # the static params.  Only contiguous reshapes + tiny pad/concat here.
    x_flat = x_stack.reshape(L, BH)
    aux = jnp.zeros((2 * rB, BH), jnp.float32)
    aux = aux.at[0:B, 0:H].set(x_stack[L - 1])
    aux = aux.at[rB:rB + B, 0:H].set(eps)
    data = jnp.concatenate([x_flat, aux], axis=0)                # (L + 2*rB, B*H)

    kernel = functools.partial(_mlp_vae_kernel, B=B, H=H, L=L, rB=rB,
                               bias_row=bias_row, attn_row=attn_row, out_w=out_w)
    vmem = pl.BlockSpec(memory_space=pltpu.MemorySpace.VMEM)
    nbytes = 4 * (data.size + params.size + out_w)
    out = pl.pallas_call(
        kernel,
        out_shape=jax.ShapeDtypeStruct((1, out_w), jnp.float32),
        in_specs=[vmem, vmem],
        out_specs=vmem,
        cost_estimate=pl.CostEstimate(
            flops=2 * B * H * (2 * H) + 2 * L * BH + 12 * BH,
            transcendentals=B * H + L,
            bytes_accessed=nbytes),
    )(data, params)

    loss = out[0, 0]
    attn = out[0, 32:32 + L].reshape(L, 1, 1)
    return loss, attn


if __name__ == "__main__":
    key = jax.random.PRNGKey(0)
    L = 32          # must be 32: vae_hidden_attention is nn.Parameter(torch.ones(32))
    B = 2
    H = 16          # input_size

    k_x, k_wm, k_bm, k_wl, k_bl, k_eps = jax.random.split(key, 6)

    x_stack = jax.random.normal(k_x, (L, B, H), dtype=jnp.float32)

    # nn.Linear default init: U(-1/sqrt(in), 1/sqrt(in))
    bound = 1.0 / (H ** 0.5)
    w_mu = jax.random.uniform(k_wm, (H, H), jnp.float32, -bound, bound)
    b_mu = jax.random.uniform(k_bm, (H,), jnp.float32, -bound, bound)
    w_lv = jax.random.uniform(k_wl, (H, H), jnp.float32, -bound, bound)
    b_lv = jax.random.uniform(k_bl, (H,), jnp.float32, -bound, bound)
    attn_param = jnp.ones((L,), dtype=jnp.float32)

    # reparameterization noise (torch.randn equivalent), deterministic here
    eps = jax.random.normal(k_eps, (B, H), dtype=jnp.float32)

    # One-time, batch-size-independent static-parameter packing.
    params = jax.block_until_ready(pack_params(w_mu, b_mu, w_lv, b_lv, attn_param))

    loss, attn = mlp_forward(x_stack, params, eps)
    jax.block_until_ready((loss, attn))

    # quick sanity check against a pure-JAX reference of the same math
    mu_r = x_stack[-1] @ w_mu.T + b_mu
    lv_r = x_stack[-1] @ w_lv.T + b_lv
    kl_r = 0.5 * jnp.mean(jnp.sum(jnp.exp(lv_r) + mu_r**2 - lv_r - 1.0, axis=-1))
    z_r = mu_r + jnp.exp(0.5 * lv_r) * eps
    a_r = jax.nn.softmax(attn_param)
    tgt_r = jnp.mean(x_stack * a_r[:, None, None], axis=0)
    rec_r = jnp.mean((z_r - tgt_r) ** 2)
    ref_loss = rec_r + kl_r
    assert jnp.allclose(loss, ref_loss, rtol=1e-5, atol=1e-5), (loss, ref_loss)
    assert attn.shape == (L, 1, 1)
    assert jnp.allclose(attn[:, 0, 0], a_r, rtol=1e-6, atol=1e-6)

    print("KERNEL_OK")
</pallas_src>

<mosaic_0001>
module attributes {stable_mosaic.version = 11 : i64} {
  func.func @_mlp_vae_kernel(%arg0: memref<48x32xf32, #tpu.memory_space<vmem>>, %arg1: memref<32x32xf32, #tpu.memory_space<vmem>>, %arg2: memref<1x128xf32, #tpu.memory_space<vmem>>) attributes {dimension_semantics = [], scalar_prefetch = 0 : i64, scratch_operands = 0 : i64, tpu.core_type = #tpu.core_type<tc>} {
    %c0 = arith.constant 0 : index
    %c0_0 = arith.constant 0 : index
    %0 = vector.load %arg0[%c0, %c0_0] : memref<48x32xf32, #tpu.memory_space<vmem>>, vector<48x32xf32>
    %1 = vector.extract_strided_slice %0 {offsets = [0, 0], sizes = [32, 32], strides = [1, 1]} : vector<48x32xf32> to vector<32x32xf32>
    %2 = vector.extract_strided_slice %0 {offsets = [32, 0], sizes = [2, 16], strides = [1, 1]} : vector<48x32xf32> to vector<2x16xf32>
    %3 = vector.extract_strided_slice %0 {offsets = [40, 0], sizes = [2, 16], strides = [1, 1]} : vector<48x32xf32> to vector<2x16xf32>
    %c0_1 = arith.constant 0 : index
    %c0_2 = arith.constant 0 : index
    %4 = vector.load %arg1[%c0_1, %c0_2] : memref<32x32xf32, #tpu.memory_space<vmem>>, vector<16x32xf32>
    %c16 = arith.constant 16 : index
    %c0_3 = arith.constant 0 : index
    %5 = vector.load %arg1[%c16, %c0_3] : memref<32x32xf32, #tpu.memory_space<vmem>>, vector<1x32xf32>
    %c24 = arith.constant 24 : index
    %c0_4 = arith.constant 0 : index
    %6 = vector.load %arg1[%c24, %c0_4] : memref<32x32xf32, #tpu.memory_space<vmem>>, vector<1x32xf32>
    %cst = arith.constant dense<0.000000e+00> : vector<2x32xf32>
    %7 = tpu.matmul %2, %4, %cst {dimension_numbers = #tpu.dot_dimension_numbers<[1], [0], [0], [1], [0, 0, 1, 1], [], []>} : vector<2x16xf32>, vector<16x32xf32>, vector<2x32xf32> -> vector<2x32xf32>
    %8 = vector.broadcast %5 : vector<1x32xf32> to vector<2x32xf32>
    %9 = arith.addf %7, %8 : vector<2x32xf32>
    %10 = vector.extract_strided_slice %9 {offsets = [0, 0], sizes = [2, 16], strides = [1, 1]} : vector<2x32xf32> to vector<2x16xf32>
    %11 = vector.extract_strided_slice %9 {offsets = [0, 16], sizes = [2, 16], strides = [1, 1]} : vector<2x32xf32> to vector<2x16xf32>
    %cst_5 = arith.constant 5.000000e-01 : f32
    %12 = vector.broadcast %cst_5 : f32 to vector<2x16xf32>
    %13 = arith.mulf %12, %11 : vector<2x16xf32>
    %14 = math.exp %13 : vector<2x16xf32>
    %15 = arith.mulf %14, %3 : vector<2x16xf32>
    %16 = arith.addf %10, %15 : vector<2x16xf32>
    %17 = arith.mulf %14, %14 : vector<2x16xf32>
    %18 = arith.mulf %10, %10 : vector<2x16xf32>
    %19 = arith.addf %17, %18 : vector<2x16xf32>
    %20 = arith.subf %19, %11 : vector<2x16xf32>
    %cst_6 = arith.constant 1.000000e+00 : f32
    %21 = vector.broadcast %cst_6 : f32 to vector<2x16xf32>
    %22 = arith.subf %20, %21 : vector<2x16xf32>
    %23 = vector.shape_cast %22 : vector<2x16xf32> to vector<1x2x16xf32>
    %cst_7 = arith.constant dense<0.000000e+00> : vector<1xf32>
    %24 = vector.multi_reduction <add>, %23, %cst_7 [1, 2] : vector<1x2x16xf32> to vector<1xf32>
    %25 = vector.shape_cast %24 : vector<1xf32> to vector<1x1x1xf32>
    %26 = vector.extract %25[0, 0, 0] : f32 from vector<1x1x1xf32>
    %cst_8 = arith.constant 5.000000e-01 : f32
    %27 = arith.mulf %cst_8, %26 : f32
    %cst_9 = arith.constant 2.000000e+00 : f32
    %28 = arith.divf %27, %cst_9 : f32
    %cst_10 = arith.constant dense<0xFF800000> : vector<1xf32>
    %29 = vector.multi_reduction <maximumf>, %6, %cst_10 [1] : vector<1x32xf32> to vector<1xf32>
    %30 = vector.shape_cast %29 : vector<1xf32> to vector<1x1xf32>
    %31 = vector.broadcast %30 : vector<1x1xf32> to vector<1x32xf32>
    %32 = arith.subf %6, %31 : vector<1x32xf32>
    %33 = math.exp %32 : vector<1x32xf32>
    %cst_11 = arith.constant dense<0.000000e+00> : vector<1xf32>
    %34 = vector.multi_reduction <add>, %33, %cst_11 [1] : vector<1x32xf32> to vector<1xf32>
    %35 = vector.shape_cast %34 : vector<1xf32> to vector<1x1xf32>
    %36 = tpu.reciprocal %35 : vector<1x1xf32> -> vector<1x1xf32>
    %37 = vector.broadcast %36 : vector<1x1xf32> to vector<1x32xf32>
    %38 = arith.mulf %33, %37 : vector<1x32xf32>
    %cst_12 = arith.constant 3.125000e-02 : f32
    %39 = vector.broadcast %cst_12 : f32 to vector<1x32xf32>
    %40 = arith.mulf %38, %39 : vector<1x32xf32>
    %cst_13 = arith.constant dense<0.000000e+00> : vector<1x32xf32>
    %41 = tpu.matmul %40, %1, %cst_13 {dimension_numbers = #tpu.dot_dimension_numbers<[1], [0], [0], [1], [0, 0, 1, 1], [], []>} : vector<1x32xf32>, vector<32x32xf32>, vector<1x32xf32> -> vector<1x32xf32>
    %cst_14 = arith.constant 0.000000e+00 : f32
    %42 = vector.broadcast %cst_14 : f32 to vector<1x16xf32>
    %43 = vector.extract_strided_slice %16 {offsets = [0, 0], sizes = [1, 16], strides = [1, 1]} : vector<2x16xf32> to vector<1x16xf32>
    %44 = vector.extract_strided_slice %41 {offsets = [0, 0], sizes = [1, 16], strides = [1, 1]} : vector<1x32xf32> to vector<1x16xf32>
    %45 = arith.subf %43, %44 : vector<1x16xf32>
    %46 = arith.mulf %45, %45 : vector<1x16xf32>
    %47 = arith.addf %42, %46 : vector<1x16xf32>
    %48 = vector.extract_strided_slice %16 {offsets = [1, 0], sizes = [1, 16], strides = [1, 1]} : vector<2x16xf32> to vector<1x16xf32>
    %49 = vector.extract_strided_slice %41 {offsets = [0, 16], sizes = [1, 16], strides = [1, 1]} : vector<1x32xf32> to vector<1x16xf32>
    %50 = arith.subf %48, %49 : vector<1x16xf32>
    %51 = arith.mulf %50, %50 : vector<1x16xf32>
    %52 = arith.addf %47, %51 : vector<1x16xf32>
    %53 = vector.shape_cast %52 : vector<1x16xf32> to vector<1x1x16xf32>
    %cst_15 = arith.constant dense<0.000000e+00> : vector<1xf32>
    %54 = vector.multi_reduction <add>, %53, %cst_15 [1, 2] : vector<1x1x16xf32> to vector<1xf32>
    %55 = vector.shape_cast %54 : vector<1xf32> to vector<1x1x1xf32>
    %56 = vector.extract %55[0, 0, 0] : f32 from vector<1x1x1xf32>
    %cst_16 = arith.constant 3.200000e+01 : f32
    %57 = arith.divf %56, %cst_16 : f32
    %cst_17 = arith.constant 0.000000e+00 : f32
    %58 = vector.broadcast %cst_17 : f32 to vector<1x128xf32>
    %c0_18 = arith.constant 0 : index
    %c0_19 = arith.constant 0 : index
    %59 = vector.load %arg2[%c0_18, %c0_19] : memref<1x128xf32, #tpu.memory_space<vmem>>, vector<1x128xf32>
    tpu.vector_store %arg2[%c0_18, %c0_19], %58 {strides = array<i32>} : memref<1x128xf32, #tpu.memory_space<vmem>>, vector<1x128xf32>,
    %60 = arith.addf %57, %28 : f32
    %61 = vector.broadcast %60 : f32 to vector<1x1xf32>
    %c0_20 = arith.constant 0 : index
    %c0_21 = arith.constant 0 : index
    %62 = vector.load %arg2[%c0_20, %c0_21] : memref<1x128xf32, #tpu.memory_space<vmem>>, vector<1x1xf32>
    tpu.vector_store %arg2[%c0_20, %c0_21], %61 {strides = array<i32>} : memref<1x128xf32, #tpu.memory_space<vmem>>, vector<1x1xf32>,
    %c0_22 = arith.constant 0 : index
    %c32 = arith.constant 32 : index
    %63 = vector.load %arg2[%c0_22, %c32] : memref<1x128xf32, #tpu.memory_space<vmem>>, vector<1x32xf32>
    tpu.vector_store %arg2[%c0_22, %c32], %38 {strides = array<i32>} : memref<1x128xf32, #tpu.memory_space<vmem>>, vector<1x32xf32>,
    return
  }
}

</mosaic_0001>

<llo_original>
// kernel: mlp_forward.1
$region0: #{mlp_forward.1}
  #allocation0 [shape = 'u32[]', space=smem, size = 0x4, offset = 0x4, fixed_abs, tag = 'smem constant byte address 0x4 - core index']
  #allocation1 [shape = 'u32[144,128]{1,0:T(1,128)}', space=vmem, size = 0x12000, scoped, tag = 'internal scratch']
  %s0 = inlined_call_operand.vmem [shape: f32[48,32], index: 0, kind: input, shape index: {}]
  %s1 = inlined_call_operand.vmem [shape: f32[32,32], index: 1, kind: input, shape index: {}]
  %s2 = inlined_call_operand.vmem [shape: f32[1,128], index: 2, kind: output, shape index: {}]
  %s3 = sld [smem:[#allocation0]]
  $region18: #{mlp_forward.1} parent=0
    _
  %s5 = ssub.s32 1, %s3
  %s6 = scalar_select 0, %s5, %s3
  // Predicated region
  $region2: #{mlp_forward.1} parent=0 // pred_check
    _
  $region3: #{mlp_forward.1} parent=0 // pred_check_branch
    %8 = sbr.rel (0) target = $region5
  $region4: #{mlp_forward.1} parent=0 // pred_region
    _
  $region5: #{mlp_forward.1} parent=0 // pred_fallthru
    _
  // Predicated region
  $region6: #{mlp_forward.1} parent=0 // pred_check
    _
  $region7: #{mlp_forward.1} parent=0 // pred_check_branch
    %10 = sbr.rel (0) target = $region9
  $region8: #{mlp_forward.1} parent=0 // pred_region
    _
  $region9: #{mlp_forward.1} parent=0 // pred_fallthru
    _
  %v11 = vld [vmem:[%s0] sm:$0xff]
  %v12 = vld [vmem:[%s0 + $0x8] sm:$0xff]
  %v13 = vld [vmem:[%s0 + $0x10] sm:$0xff]
  %v14 = vld [vmem:[%s0 + $0x18] sm:$0xff]
  %v15 = vld [vmem:[%s0 + $0x20] sm:$0xff]
  %v16 = vld [vmem:[%s0 + $0x28] sm:$0xff]
  %v17 = vld [vmem:[%s1] sm:$0xff]
  %v18 = vld [vmem:[%s1 + $0x8] sm:$0xff]
  %v19 = vld [vmem:[%s1 + $0x10] sm:$0x1]
  %v20 = vld [vmem:[%s1 + $0x18] sm:$0x1]
  %v21 = vlaneseq
  %v22 = vshrl.u32 %v21, 7
  %v23 = vsub.s32 0, %v22
  %v24 = vrot.slane %v19, %v23
  %vm25 = vcmask 130048
  %v27 = vsel %vm25, %v15, 0
  %29 = vmatprep.subr.mxu0 0.0
  %30 = vmatpush1.msra.mxu0 0.0
  %31 = vmatprep.subr.mxu0 0.0
  %32 = vmatpush1.msra.mxu0 0.0
  %33 = vmatprep.subr.mxu0 0.0
  %34 = vmatpush1.msra.mxu0 0.0
  %35 = vmatprep.subr.mxu0 0.0
  %36 = vmatpush1.msra.mxu0 0.0
  %37 = vmatprep.subr.mxu0 0.0
  %38 = vmatpush1.msra.mxu0 0.0
  %39 = vmatprep.subr.mxu0 0.0
  %40 = vmatpush1.msra.mxu0 0.0
  %41 = vmatprep.subr.mxu0 0.0
  %42 = vmatpush1.msra.mxu0 0.0
  %43 = vmatprep.subr.mxu0 0.0
  %44 = vmatpush1.msra.mxu0 0.0
  %45 = vmatprep.subr.mxu0 0.0
  %46 = vmatpush1.msra.mxu0 0.0
  %47 = vmatprep.subr.mxu0 0.0
  %48 = vmatpush1.msra.mxu0 0.0
  %49 = vmatprep.subr.mxu0 0.0
  %50 = vmatpush1.msra.mxu0 0.0
  %51 = vmatprep.subr.mxu0 0.0
  %52 = vmatpush1.msra.mxu0 0.0
  %53 = vmatprep.subr.mxu0 0.0
  %54 = vmatpush1.msra.mxu0 0.0
  %55 = vmatprep.subr.mxu0 0.0
  %56 = vmatpush1.msra.mxu0 0.0
  %57 = vmatprep.subr.mxu0 0.0
  %58 = vmatpush1.msra.mxu0 %v18
  %59 = vmatprep.subr.mxu0 0.0
  %60 = vmatpush1.msra.mxu0 %v17
  %61 = vmatprep.subr.mxu0 0.0
  %62 = vmatpush2.msra.mxu0 0.0
  %63 = vmatprep.subr.mxu0 0.0
  %64 = vmatpush2.msra.mxu0 0.0
  %65 = vmatprep.subr.mxu0 0.0
  %66 = vmatpush2.msra.mxu0 0.0
  %67 = vmatprep.subr.mxu0 0.0
  %68 = vmatpush2.msra.mxu0 0.0
  %69 = vmatprep.subr.mxu0 0.0
  %70 = vmatpush2.msra.mxu0 0.0
  %71 = vmatprep.subr.mxu0 0.0
  %72 = vmatpush2.msra.mxu0 0.0
  %73 = vmatprep.subr.mxu0 0.0
  %74 = vmatpush2.msra.mxu0 0.0
  %75 = vmatprep.subr.mxu0 0.0
  %76 = vmatpush2.msra.mxu0 0.0
  %77 = vmatprep.subr.mxu0 0.0
  %78 = vmatpush2.msra.mxu0 0.0
  %79 = vmatprep.subr.mxu0 0.0
  %80 = vmatpush2.msra.mxu0 0.0
  %81 = vmatprep.subr.mxu0 0.0
  %82 = vmatpush2.msra.mxu0 0.0
  %83 = vmatprep.subr.mxu0 0.0
  %84 = vmatpush2.msra.mxu0 0.0
  %85 = vmatprep.subr.mxu0 0.0
  %86 = vmatpush2.msra.mxu0 0.0
  %87 = vmatprep.subr.mxu0 0.0
  %88 = vmatpush2.msra.mxu0 0.0
  %89 = vmatprep.subr.mxu0 0.0
  %90 = vmatpush2.msra.mxu0 0.0
  %91 = vmatprep.subr.mxu0 0.0
  %92 = vmatpush2.msra.mxu0 0.0
  %93 = vmatprep.mubr.f32.mxu0 0.0
  %94 = vmatmul.mubr.f32.gmra.mxu0 %v27
  %v95 = vpop.f32.mrf.mxu0
  %v96 = vadd.f32 %v24, %v95
  %v97 = vpop.f32.mrf.mxu0
  %98 = vdwg.mxu0
  %v99 = vmul.f32 %v96, 0.5
  %v100 = vmul.f32 %v99, 1.442695
  %v101 = vpow.pop %v100
  %103 = vrot.lane.b32.xlu0 %v16, 16
  %v104 = vpop.permute.xlu0 %103
  %v106 = vmul.f32 %v101, %v104
  %108 = vrot.lane.b32.xlu0 %v106, 112
  %v109 = vpop.permute.xlu0 %108
  %v111 = vadd.f32 %v96, %v109
  %v112 = vmul.f32 %v101, %v101
  %v113 = vmul.f32 %v96, %v96
  %115 = vrot.lane.b32.xlu0 %v113, 16
  %v116 = vpop.permute.xlu0 %115
  %v118 = vadd.f32 %v112, %v116
  %v119 = vsub.f32 %v118, %v96
  %v120 = vsub.f32 %v119, 1.0
  %122 = vrot.lane.b32.xlu0 %v120, 112
  %v123 = vpop.permute.xlu0 %122
  %vm125 = vcmask 123904
  %v126 = vsel %vm125, %v123, 0.0
  %127 = vadd.xlane.f32.xlu0 %v126
  %v128 = vpop.xlane.xlu0 %127
  %v129 = vrot.slane %v128, 4
  %v130 = vadd.f32 %v128, %v129
  %v131 = vrot.slane %v130, 2
  %v132 = vadd.f32 %v130, %v131
  %v133 = vrot.slane %v132, 1
  %v134 = vadd.f32 %v132, %v133
  %s135 = vtos %v134
  %s136 = smul.f32 %s135, 0.5
  %v137 = vrcp.pop 2.0
  %s138 = vtos %v137
  %s139 = smul.f32 %s136, %s138
  %vm140 = vcmask 253952
  %v141 = vsel %vm140, %v20, -inf
  %142 = vmax.xlane.f32.xlu0 %v141
  %v143 = vpop.xlane.xlu0 %142
  %v144 = vsub.f32 %v20, %v143
  %v145 = vmul.f32 %v144, 1.442695
  %v146 = vpow.pop %v145
  %v147 = vsel %vm140, %v146, 0.0
  %148 = vadd.xlane.f32.xlu0 %v147
  %v149 = vpop.xlane.xlu0 %148
  %v150 = vrcp.pop %v149
  %v151 = vmul.f32 %v146, %v150
  %v152 = vmul.f32 %v151, 0.03125
  %vm153 = vcmask 261120
  %v155 = vsel %vm153, %v152, 0
  %157 = vmatprep.subr.mxu0 0.0
  %158 = vmatpush1.msra.mxu0 0.0
  %159 = vmatprep.subr.mxu0 0.0
  %160 = vmatpush1.msra.mxu0 0.0
  %161 = vmatprep.subr.mxu0 0.0
  %162 = vmatpush1.msra.mxu0 0.0
  %163 = vmatprep.subr.mxu0 0.0
  %164 = vmatpush1.msra.mxu0 0.0
  %165 = vmatprep.subr.mxu0 0.0
  %166 = vmatpush1.msra.mxu0 0.0
  %167 = vmatprep.subr.mxu0 0.0
  %168 = vmatpush1.msra.mxu0 0.0
  %169 = vmatprep.subr.mxu0 0.0
  %170 = vmatpush1.msra.mxu0 0.0
  %171 = vmatprep.subr.mxu0 0.0
  %172 = vmatpush1.msra.mxu0 0.0
  %173 = vmatprep.subr.mxu0 0.0
  %174 = vmatpush1.msra.mxu0 0.0
  %175 = vmatprep.subr.mxu0 0.0
  %176 = vmatpush1.msra.mxu0 0.0
  %177 = vmatprep.subr.mxu0 0.0
  %178 = vmatpush1.msra.mxu0 0.0
  %179 = vmatprep.subr.mxu0 0.0
  %180 = vmatpush1.msra.mxu0 0.0
  %181 = vmatprep.subr.mxu0 0.0
  %182 = vmatpush1.msra.mxu0 %v14
  %183 = vmatprep.subr.mxu0 0.0
  %184 = vmatpush1.msra.mxu0 %v13
  %185 = vmatprep.subr.mxu0 0.0
  %186 = vmatpush1.msra.mxu0 %v12
  %187 = vmatprep.subr.mxu0 0.0
  %188 = vmatpush1.msra.mxu0 %v11
  %189 = vmatprep.subr.mxu0 0.0
  %190 = vmatpush2.msra.mxu0 0.0
  %191 = vmatprep.subr.mxu0 0.0
  %192 = vmatpush2.msra.mxu0 0.0
  %193 = vmatprep.subr.mxu0 0.0
  %194 = vmatpush2.msra.mxu0 0.0
  %195 = vmatprep.subr.mxu0 0.0
  %196 = vmatpush2.msra.mxu0 0.0
  %197 = vmatprep.subr.mxu0 0.0
  %198 = vmatpush2.msra.mxu0 0.0
  %199 = vmatprep.subr.mxu0 0.0
  %200 = vmatpush2.msra.mxu0 0.0
  %201 = vmatprep.subr.mxu0 0.0
  %202 = vmatpush2.msra.mxu0 0.0
  %203 = vmatprep.subr.mxu0 0.0
  %204 = vmatpush2.msra.mxu0 0.0
  %205 = vmatprep.subr.mxu0 0.0
  %206 = vmatpush2.msra.mxu0 0.0
  %207 = vmatprep.subr.mxu0 0.0
  %208 = vmatpush2.msra.mxu0 0.0
  %209 = vmatprep.subr.mxu0 0.0
  %210 = vmatpush2.msra.mxu0 0.0
  %211 = vmatprep.subr.mxu0 0.0
  %212 = vmatpush2.msra.mxu0 0.0
  %213 = vmatprep.subr.mxu0 0.0
  %214 = vmatpush2.msra.mxu0 0.0
  %215 = vmatprep.subr.mxu0 0.0
  %216 = vmatpush2.msra.mxu0 0.0
  %217 = vmatprep.subr.mxu0 0.0
  %218 = vmatpush2.msra.mxu0 0.0
  %219 = vmatprep.subr.mxu0 0.0
  %220 = vmatpush2.msra.mxu0 0.0
  %221 = vmatprep.mubr.f32.mxu0 0.0
  %222 = vmatmul.mubr.f32.gmra.mxu0 %v155
  %v223 = vpop.f32.mrf.mxu0
  %v224 = vadd.f32 0.0, %v223
  %v225 = vpop.f32.mrf.mxu0
  %226 = vdwg.mxu0
  %v227 = vsub.f32 %v111, %v224
  %v228 = vmul.f32 %v227, %v227
  %v229 = vadd.f32 %v228, 0.0
  %v231 = vrot.slane %v224, 7
  %232 = vrot.lane.b32.xlu0 %v231, 112
  %v233 = vpop.permute.xlu0 %232
  %v235 = vsub.f32 %v111, %v233
  %v236 = vmul.f32 %v235, %v235
  %v238 = vrot.slane %v236, 1
  %v240 = vadd.f32 %v229, %v238
  %vm241 = vcmask 122880
  %v242 = vsel %vm241, %v240, 0.0
  %243 = vadd.xlane.f32.xlu0 %v242
  %v244 = vpop.xlane.xlu0 %243
  %v245 = vrot.slane %v244, 4
  %v246 = vadd.f32 %v244, %v245
  %v247 = vrot.slane %v246, 2
  %v248 = vadd.f32 %v246, %v247
  %v249 = vrot.slane %v248, 1
  %v250 = vadd.f32 %v248, %v249
  %s251 = vtos %v250
  %v252 = vrcp.pop 32.0
  %s253 = vtos %v252
  %s254 = smul.f32 %s251, %s253
  %255 = vst [vmem:[%s2] sm:$0x1] 0.0
  %s256 = sadd.f32 %s254, %s139
  %v257 = vstv %s256
  %vm258 = vcmask 0
  %259 = vst.msk [vmem:[%s2] sm:$0x1] %vm258, %v257
  %261 = vrot.lane.b32.xlu0 %v151, 32
  %v262 = vpop.permute.xlu0 %261
  %vm264 = vcmask 516352
  %265 = vst.msk [vmem:[%s2] sm:$0x1] %vm264, %v262
  // Predicated region
  $region10: #{mlp_forward.1} parent=0 // pred_check
    _
  $region11: #{mlp_forward.1} parent=0 // pred_check_branch
    %267 = sbr.rel (0) target = $region13
  $region12: #{mlp_forward.1} parent=0 // pred_region
    _
  $region13: #{mlp_forward.1} parent=0 // pred_fallthru
    _
  // Predicated region
  $region14: #{mlp_forward.1} parent=0 // pred_check
    _
  $region15: #{mlp_forward.1} parent=0 // pred_check_branch
    %269 = sbr.rel (0) target = $region17
  $region16: #{mlp_forward.1} parent=0 // pred_region
    _
  $region17: #{mlp_forward.1} parent=0 // pred_fallthru
    _

</llo_original>
